<compile_context>
chip_gen: v6e
topology: v6e:2x2x1
jax: 0.10.0
libtpu: 0.0.40
codegen_flags: <defaults>
</compile_context>

<pallas_src>
import math

import jax
import jax.numpy as jnp
from jax import lax
from jax.experimental import pallas as pl
from jax.experimental.pallas import tpu as pltpu

_INV_SQRT2 = 1.0 / math.sqrt(2.0)


def adapter_kernel(x_ref, pos_ref, g_ref, beta_ref, w1_ref, b1_ref,
                   w2_ref, b2_ref, o_ref, h_ref):
    """Produce one (tile_m, tile_n) tile of linear2's output.

    Grid = (M tiles, N tiles of Cout), N innermost. The part that only
    depends on the M tile (LayerNorm, +pos, linear1, GELU) is computed once
    at j == 0 into the bf16 scratch h_ref and reused for every N tile.
    """
    @pl.when(pl.program_id(1) == 0)
    def _():
        x = x_ref[...].astype(jnp.float32)            # bf16 in HBM, f32 math

        # LayerNorm over channels (biased variance, eps=1e-5, PyTorch default).
        mean = jnp.mean(x, axis=-1, keepdims=True)
        xc = x - mean
        var = jnp.mean(xc * xc, axis=-1, keepdims=True)
        xn = xc * lax.rsqrt(var + 1e-5)
        xn = xn * g_ref[...] + beta_ref[...]

        # Positional embedding (bf16 tile, promotes to f32 in the add).
        xn = xn + pos_ref[...]

        # linear1: bf16 MXU inputs, f32 accumulation; exact erf GELU in f32.
        h = jnp.dot(xn.astype(jnp.bfloat16), w1_ref[...],
                    preferred_element_type=jnp.float32) + b1_ref[...]
        h = 0.5 * h * (1.0 + lax.erf(h * _INV_SQRT2))
        h_ref[...] = h.astype(jnp.bfloat16)

    # linear2 over one N tile of the output columns.
    o_ref[...] = (jnp.dot(h_ref[...], w2_ref[...],
                          preferred_element_type=jnp.float32)
                  + b2_ref[...]).astype(o_ref.dtype)


def _round_up(v, m):
    return -(-v // m) * m


def image_adapter_forward(x, params, *, block_rows=256, block_cols=512):
    """x: (B, T, Cin) float32. Returns (B, T + 2, Cout) float32."""
    B, T, Cin = x.shape
    Cout = params["w1"].shape[1]
    assert Cin % 128 == 0 and Cout % 128 == 0, "lane-dense channel dims required"

    # ---- tiling ---------------------------------------------------------
    # M tile: multiple of 16 (bf16 sublane packing). T is padded per image to
    # a multiple of tile_m so every M tile lies inside one image, which keeps
    # the pos_emb index_map a simple modulo (no per-row gather).
    tile_m = _round_up(min(block_rows, _round_up(T, 16)), 16)
    t_pad = _round_up(T, tile_m)
    tpm = t_pad // tile_m                              # M tiles per image

    # N tile over W2's output columns.
    tile_n = math.gcd(Cout, max(block_cols, 128))
    if tile_n % 128 != 0:
        tile_n = Cout

    m_total = B * t_pad
    num_m = m_total // tile_m
    num_n = Cout // tile_n

    # ---- operand prep ---------------------------------------------------
    xb = x.astype(jnp.bfloat16)
    pos = params["pos_emb"].astype(jnp.bfloat16)
    if t_pad != T:
        xb = jnp.pad(xb, ((0, 0), (0, t_pad - T), (0, 0)))
        pos = jnp.pad(pos, ((0, t_pad - T), (0, 0)))
    x_flat = xb.reshape(m_total, Cin)

    w1 = params["w1"].astype(jnp.bfloat16)
    w2 = params["w2"].astype(jnp.bfloat16)
    b1 = params["b1"].astype(jnp.float32).reshape(1, Cout)
    b2 = params["b2"].astype(jnp.float32).reshape(1, Cout)
    gamma = params["ln_gamma"].astype(jnp.float32).reshape(1, Cin)
    beta = params["ln_beta"].astype(jnp.float32).reshape(1, Cin)

    # ---- compiler hints --------------------------------------------------
    try:
        vmem_cap = pltpu.get_tpu_info().vmem_capacity_bytes
    except Exception:
        vmem_cap = 64 * 1024 * 1024
    vmem_limit = int(max(32 << 20, min(vmem_cap - (8 << 20), 100 << 20)))

    flops = 2 * m_total * Cout * (Cin + Cout)
    bytes_accessed = (m_total * Cin * 2          # x (bf16)
                      + t_pad * Cin * 2          # pos (bf16)
                      + Cin * Cout * 2           # W1 (bf16)
                      + Cout * Cout * 2          # W2 (bf16)
                      + m_total * Cout * 4       # output (f32)
                      + (2 * Cout + 2 * Cin) * 4)
    cost = pl.CostEstimate(flops=flops, transcendentals=m_total * Cout,
                           bytes_accessed=bytes_accessed)

    single = pl.Buffered(1)        # grid-invariant operands: one buffer only

    out2d = pl.pallas_call(
        adapter_kernel,
        out_shape=jax.ShapeDtypeStruct((m_total, Cout), jnp.float32),
        grid=(num_m, num_n),
        in_specs=[
            pl.BlockSpec((tile_m, Cin), lambda i, j: (i, 0)),            # x
            pl.BlockSpec((tile_m, Cin),
                         lambda i, j, _t=tpm: (i % _t, 0)),              # pos
            pl.BlockSpec((1, Cin), lambda i, j: (0, 0),
                         pipeline_mode=single),                          # gamma
            pl.BlockSpec((1, Cin), lambda i, j: (0, 0),
                         pipeline_mode=single),                          # beta
            pl.BlockSpec((Cin, Cout), lambda i, j: (0, 0),
                         pipeline_mode=single),                          # W1
            pl.BlockSpec((1, Cout), lambda i, j: (0, 0),
                         pipeline_mode=single),                          # b1
            pl.BlockSpec((Cout, tile_n), lambda i, j: (0, j)),           # W2
            pl.BlockSpec((1, tile_n), lambda i, j: (0, j)),              # b2
        ],
        out_specs=pl.BlockSpec((tile_m, tile_n), lambda i, j: (i, j)),
        scratch_shapes=[pltpu.VMEM((tile_m, Cout), jnp.bfloat16)],
        compiler_params=pltpu.CompilerParams(
            dimension_semantics=("parallel", "arbitrary"),
            vmem_limit_bytes=vmem_limit),
        cost_estimate=cost,
    )(x_flat, pos, gamma, beta, w1, b1, w2, b2)

    # Strip the per-image T padding and splice in the two boundary tokens
    # (single cheap HBM pass in the wrapper, vs. the two large matmuls).
    y = out2d.reshape(B, t_pad, Cout)[:, :T, :]
    tok0 = jnp.broadcast_to(
        params["other_tokens"][0][None, None, :], (B, 1, Cout)).astype(y.dtype)
    tok1 = jnp.broadcast_to(
        params["other_tokens"][1][None, None, :], (B, 1, Cout)).astype(y.dtype)
    return jnp.concatenate([tok0, y, tok1], axis=1)


def init_params(key, input_features, output_features, num_image_tokens):
    """Deterministic synthetic parameters (nn.Linear W pre-transposed to (in,out))."""
    ks = jax.random.split(key, 6)
    w1 = (jax.random.normal(ks[0], (input_features, output_features),
                            jnp.float32) * 0.02).astype(jnp.bfloat16)
    b1 = jax.random.normal(ks[1], (output_features,), jnp.float32) * 0.02
    w2 = (jax.random.normal(ks[2], (output_features, output_features),
                            jnp.float32) * 0.02).astype(jnp.bfloat16)
    b2 = jax.random.normal(ks[3], (output_features,), jnp.float32) * 0.02
    ln_gamma = jnp.ones((input_features,), jnp.float32)
    ln_beta = jnp.zeros((input_features,), jnp.float32)
    pos_emb = jax.random.normal(ks[4], (num_image_tokens, input_features),
                                jnp.float32) * 0.02
    other_tokens = jax.random.normal(ks[5], (3, output_features),
                                     jnp.float32) * 0.02
    return {
        "w1": w1, "b1": b1, "w2": w2, "b2": b2,
        "ln_gamma": ln_gamma, "ln_beta": ln_beta,
        "pos_emb": pos_emb, "other_tokens": other_tokens,
    }


if __name__ == "__main__":
    # Small shapes: lane-dense channels; T=24 with tile_m=16 exercises the
    # per-image T padding path; Cout=256 with tile_n=128 exercises N-tiling
    # and the @pl.when(j == 0) h-scratch reuse; grid = (6, 2).
    B, T, Cin, Cout = 3, 24, 128, 256

    key = jax.random.PRNGKey(0)
    kx, kp = jax.random.split(key)
    x = jax.random.normal(kx, (B, T, Cin), jnp.float32)      # vision_outputs[-2]
    params = init_params(kp, Cin, Cout, T)

    out = image_adapter_forward(x, params, block_rows=16, block_cols=128)
    out = jax.block_until_ready(out)
    assert out.shape == (B, T + 2, Cout), out.shape

    # Pure-JAX reference mirroring the kernel's precision choices
    # (bf16 x / weights / matmul inputs, f32 accumulation and LN/GELU math).
    xr = x.astype(jnp.bfloat16).astype(jnp.float32)
    mean = jnp.mean(xr, axis=-1, keepdims=True)
    var = jnp.mean((xr - mean) ** 2, axis=-1, keepdims=True)
    xn = (xr - mean) * lax.rsqrt(var + 1e-5) * params["ln_gamma"] + params["ln_beta"]
    xn = xn + params["pos_emb"].astype(jnp.bfloat16).astype(jnp.float32)
    h = jnp.dot(xn.astype(jnp.bfloat16), params["w1"],
                preferred_element_type=jnp.float32) + params["b1"]
    h = 0.5 * h * (1.0 + lax.erf(h * _INV_SQRT2))
    y = jnp.dot(h.astype(jnp.bfloat16), params["w2"],
                preferred_element_type=jnp.float32) + params["b2"]
    tok0 = jnp.broadcast_to(params["other_tokens"][0][None, None, :], (B, 1, Cout))
    tok1 = jnp.broadcast_to(params["other_tokens"][1][None, None, :], (B, 1, Cout))
    ref = jnp.concatenate([tok0, y, tok1], axis=1)

    err = float(jnp.max(jnp.abs(out - ref)))
    assert jnp.allclose(out, ref, atol=2e-3, rtol=2e-2), err
    print("KERNEL_OK")
</pallas_src>

<mosaic_0001>
module attributes {stable_mosaic.version = 11 : i64} {
  func.func @adapter_kernel(%arg0: i32, %arg1: i32, %arg2: memref<16x128xbf16, #tpu.memory_space<vmem>>, %arg3: memref<16x128xbf16, #tpu.memory_space<vmem>>, %arg4: memref<1x128xf32, #tpu.memory_space<vmem>>, %arg5: memref<1x128xf32, #tpu.memory_space<vmem>>, %arg6: memref<128x256xbf16, #tpu.memory_space<vmem>>, %arg7: memref<1x256xf32, #tpu.memory_space<vmem>>, %arg8: memref<256x128xbf16, #tpu.memory_space<vmem>>, %arg9: memref<1x128xf32, #tpu.memory_space<vmem>>, %arg10: memref<16x128xf32, #tpu.memory_space<vmem>>, %arg11: memref<16x256xbf16, #tpu.memory_space<vmem>>) attributes {dimension_semantics = [#tpu.dimension_semantics<parallel>, #tpu.dimension_semantics<arbitrary>], iteration_bounds = array<i64: 6, 2>, scalar_prefetch = 0 : i64, scratch_operands = 1 : i64, tpu.core_type = #tpu.core_type<tc>, window_params = [{transform_indices = @transform_0, window_bounds = array<i64: 16, 128>}, {transform_indices = @transform_1, window_bounds = array<i64: 16, 128>}, {pipeline_mode = #tpu.pipeline_mode<synchronous>, transform_indices = @transform_2, window_bounds = array<i64: 1, 128>}, {pipeline_mode = #tpu.pipeline_mode<synchronous>, transform_indices = @transform_3, window_bounds = array<i64: 1, 128>}, {pipeline_mode = #tpu.pipeline_mode<synchronous>, transform_indices = @transform_4, window_bounds = array<i64: 128, 256>}, {pipeline_mode = #tpu.pipeline_mode<synchronous>, transform_indices = @transform_5, window_bounds = array<i64: 1, 256>}, {transform_indices = @transform_6, window_bounds = array<i64: 256, 128>}, {transform_indices = @transform_7, window_bounds = array<i64: 1, 128>}, {transform_indices = @transform_8, window_bounds = array<i64: 16, 128>}]} {
    %c0_i32 = arith.constant 0 : i32
    %0 = arith.cmpi eq, %arg1, %c0_i32 : i32
    %1 = arith.extui %0 : i1 to i32
    %c0_i32_0 = arith.constant 0 : i32
    %2 = arith.cmpi ne, %1, %c0_i32_0 : i32
    scf.if %2 {
      %c0_8 = arith.constant 0 : index
      %c0_9 = arith.constant 0 : index
      %10 = vector.load %arg2[%c0_8, %c0_9] : memref<16x128xbf16, #tpu.memory_space<vmem>>, vector<16x128xbf16>
      %11 = arith.extf %10 : vector<16x128xbf16> to vector<16x128xf32>
      %cst_10 = arith.constant dense<0.000000e+00> : vector<16xf32>
      %12 = vector.multi_reduction <add>, %11, %cst_10 [1] : vector<16x128xf32> to vector<16xf32>
      %13 = vector.shape_cast %12 : vector<16xf32> to vector<16x1xf32>
      %cst_11 = arith.constant 1.280000e+02 : f32
      %14 = vector.broadcast %cst_11 : f32 to vector<16x1xf32>
      %15 = arith.divf %13, %14 : vector<16x1xf32>
      %16 = vector.broadcast %15 : vector<16x1xf32> to vector<16x128xf32>
      %17 = arith.subf %11, %16 : vector<16x128xf32>
      %18 = arith.mulf %17, %17 : vector<16x128xf32>
      %cst_12 = arith.constant dense<0.000000e+00> : vector<16xf32>
      %19 = vector.multi_reduction <add>, %18, %cst_12 [1] : vector<16x128xf32> to vector<16xf32>
      %20 = vector.shape_cast %19 : vector<16xf32> to vector<16x1xf32>
      %cst_13 = arith.constant 1.280000e+02 : f32
      %21 = vector.broadcast %cst_13 : f32 to vector<16x1xf32>
      %22 = arith.divf %20, %21 : vector<16x1xf32>
      %cst_14 = arith.constant 9.99999974E-6 : f32
      %23 = vector.broadcast %cst_14 : f32 to vector<16x1xf32>
      %24 = arith.addf %22, %23 : vector<16x1xf32>
      %25 = math.rsqrt %24 : vector<16x1xf32>
      %26 = vector.broadcast %25 : vector<16x1xf32> to vector<16x128xf32>
      %27 = arith.mulf %17, %26 : vector<16x128xf32>
      %c0_15 = arith.constant 0 : index
      %c0_16 = arith.constant 0 : index
      %28 = vector.load %arg4[%c0_15, %c0_16] : memref<1x128xf32, #tpu.memory_space<vmem>>, vector<1x128xf32>
      %29 = vector.broadcast %28 : vector<1x128xf32> to vector<16x128xf32>
      %30 = arith.mulf %27, %29 : vector<16x128xf32>
      %c0_17 = arith.constant 0 : index
      %c0_18 = arith.constant 0 : index
      %31 = vector.load %arg5[%c0_17, %c0_18] : memref<1x128xf32, #tpu.memory_space<vmem>>, vector<1x128xf32>
      %32 = vector.broadcast %31 : vector<1x128xf32> to vector<16x128xf32>
      %33 = arith.addf %30, %32 : vector<16x128xf32>
      %c0_19 = arith.constant 0 : index
      %c0_20 = arith.constant 0 : index
      %34 = vector.load %arg3[%c0_19, %c0_20] : memref<16x128xbf16, #tpu.memory_space<vmem>>, vector<16x128xbf16>
      %35 = arith.extf %34 : vector<16x128xbf16> to vector<16x128xf32>
      %36 = arith.addf %33, %35 : vector<16x128xf32>
      %37 = arith.truncf %36 : vector<16x128xf32> to vector<16x128xbf16>
      %c0_21 = arith.constant 0 : index
      %c0_22 = arith.constant 0 : index
      %38 = vector.load %arg6[%c0_21, %c0_22] : memref<128x256xbf16, #tpu.memory_space<vmem>>, vector<128x256xbf16>
      %cst_23 = arith.constant dense<0.000000e+00> : vector<16x256xf32>
      %39 = tpu.matmul %37, %38, %cst_23 {dimension_numbers = #tpu.dot_dimension_numbers<[1], [0], [0], [1], [0, 0, 1, 1], [], []>} : vector<16x128xbf16>, vector<128x256xbf16>, vector<16x256xf32> -> vector<16x256xf32>
      %c0_24 = arith.constant 0 : index
      %c0_25 = arith.constant 0 : index
      %40 = vector.load %arg7[%c0_24, %c0_25] : memref<1x256xf32, #tpu.memory_space<vmem>>, vector<1x256xf32>
      %41 = vector.broadcast %40 : vector<1x256xf32> to vector<16x256xf32>
      %42 = arith.addf %39, %41 : vector<16x256xf32>
      %cst_26 = arith.constant 5.000000e-01 : f32
      %43 = vector.broadcast %cst_26 : f32 to vector<16x256xf32>
      %44 = arith.mulf %43, %42 : vector<16x256xf32>
      %cst_27 = arith.constant 0.707106769 : f32
      %45 = vector.broadcast %cst_27 : f32 to vector<16x256xf32>
      %46 = arith.mulf %42, %45 : vector<16x256xf32>
      %47 = math.erf %46 : vector<16x256xf32>
      %cst_28 = arith.constant 1.000000e+00 : f32
      %48 = vector.broadcast %cst_28 : f32 to vector<16x256xf32>
      %49 = arith.addf %48, %47 : vector<16x256xf32>
      %50 = arith.mulf %44, %49 : vector<16x256xf32>
      %51 = arith.truncf %50 : vector<16x256xf32> to vector<16x256xbf16>
      %c0_29 = arith.constant 0 : index
      %c0_30 = arith.constant 0 : index
      %52 = vector.load %arg11[%c0_29, %c0_30] : memref<16x256xbf16, #tpu.memory_space<vmem>>, vector<16x256xbf16>
      tpu.vector_store %arg11[%c0_29, %c0_30], %51 {strides = array<i32>} : memref<16x256xbf16, #tpu.memory_space<vmem>>, vector<16x256xbf16>,
    } else {
    }
    %c0 = arith.constant 0 : index
    %c0_1 = arith.constant 0 : index
    %3 = vector.load %arg11[%c0, %c0_1] : memref<16x256xbf16, #tpu.memory_space<vmem>>, vector<16x256xbf16>
    %c0_2 = arith.constant 0 : index
    %c0_3 = arith.constant 0 : index
    %4 = vector.load %arg8[%c0_2, %c0_3] : memref<256x128xbf16, #tpu.memory_space<vmem>>, vector<256x128xbf16>
    %cst = arith.constant dense<0.000000e+00> : vector<16x128xf32>
    %5 = tpu.matmul %3, %4, %cst {dimension_numbers = #tpu.dot_dimension_numbers<[1], [0], [0], [1], [0, 0, 1, 1], [], []>} : vector<16x256xbf16>, vector<256x128xbf16>, vector<16x128xf32> -> vector<16x128xf32>
    %c0_4 = arith.constant 0 : index
    %c0_5 = arith.constant 0 : index
    %6 = vector.load %arg9[%c0_4, %c0_5] : memref<1x128xf32, #tpu.memory_space<vmem>>, vector<1x128xf32>
    %7 = vector.broadcast %6 : vector<1x128xf32> to vector<16x128xf32>
    %8 = arith.addf %5, %7 : vector<16x128xf32>
    %c0_6 = arith.constant 0 : index
    %c0_7 = arith.constant 0 : index
    %9 = vector.load %arg10[%c0_6, %c0_7] : memref<16x128xf32, #tpu.memory_space<vmem>>, vector<16x128xf32>
    tpu.vector_store %arg10[%c0_6, %c0_7], %8 {strides = array<i32>} : memref<16x128xf32, #tpu.memory_space<vmem>>, vector<16x128xf32>,
    return
  }
  func.func @transform_0(%arg0: i32, %arg1: i32) -> (i32, i32) {
    %c0_i32 = arith.constant 0 : i32
    %c0_i32_0 = arith.constant 0 : i32
    return %arg0, %c0_i32 : i32, i32
  }
  func.func @transform_1(%arg0: i32, %arg1: i32) -> (i32, i32) {
    %c2_i32 = arith.constant 2 : i32
    %c0_i32 = arith.constant 0 : i32
    %0 = arith.cmpi eq, %c2_i32, %c0_i32 : i32
    %c1_i32 = arith.constant 1 : i32
    %1 = arith.select %0, %c1_i32, %c2_i32 : i32
    %2 = arith.remsi %arg0, %1 : i32
    %c0_i32_0 = arith.constant 0 : i32
    %3 = arith.cmpi ne, %2, %c0_i32_0 : i32
    %c0_i32_1 = arith.constant 0 : i32
    %4 = arith.cmpi slt, %2, %c0_i32_1 : i32
    %c0_i32_2 = arith.constant 0 : i32
    %5 = arith.cmpi slt, %1, %c0_i32_2 : i32
    %6 = arith.xori %4, %5 : i1
    %7 = arith.andi %6, %3 : i1
    %8 = arith.addi %2, %1 : i32
    %9 = arith.select %7, %8, %2 : i32
    %c0_i32_3 = arith.constant 0 : i32
    %c0_i32_4 = arith.constant 0 : i32
    return %9, %c0_i32_3 : i32, i32
  }
  func.func @transform_2(%arg0: i32, %arg1: i32) -> (i32, i32) {
    %c0_i32 = arith.constant 0 : i32
    %c0_i32_0 = arith.constant 0 : i32
    %c0_i32_1 = arith.constant 0 : i32
    return %c0_i32, %c0_i32_0 : i32, i32
  }
  func.func @transform_3(%arg0: i32, %arg1: i32) -> (i32, i32) {
    %c0_i32 = arith.constant 0 : i32
    %c0_i32_0 = arith.constant 0 : i32
    %c0_i32_1 = arith.constant 0 : i32
    return %c0_i32, %c0_i32_0 : i32, i32
  }
  func.func @transform_4(%arg0: i32, %arg1: i32) -> (i32, i32) {
    %c0_i32 = arith.constant 0 : i32
    %c0_i32_0 = arith.constant 0 : i32
    %c0_i32_1 = arith.constant 0 : i32
    return %c0_i32, %c0_i32_0 : i32, i32
  }
  func.func @transform_5(%arg0: i32, %arg1: i32) -> (i32, i32) {
    %c0_i32 = arith.constant 0 : i32
    %c0_i32_0 = arith.constant 0 : i32
    %c0_i32_1 = arith.constant 0 : i32
    return %c0_i32, %c0_i32_0 : i32, i32
  }
  func.func @transform_6(%arg0: i32, %arg1: i32) -> (i32, i32) {
    %c0_i32 = arith.constant 0 : i32
    %c0_i32_0 = arith.constant 0 : i32
    return %c0_i32, %arg1 : i32, i32
  }
  func.func @transform_7(%arg0: i32, %arg1: i32) -> (i32, i32) {
    %c0_i32 = arith.constant 0 : i32
    %c0_i32_0 = arith.constant 0 : i32
    return %c0_i32, %arg1 : i32, i32
  }
  func.func @transform_8(%arg0: i32, %arg1: i32) -> (i32, i32) {
    %c0_i32 = arith.constant 0 : i32
    return %arg0, %arg1 : i32, i32
  }
}

</mosaic_0001>

<llo_original>
// kernel: tpu_custom_call.1
$region0: #{tpu_custom_call.1}
  #allocation0 [shape = 'u32[]', space=smem, size = 0x4, offset = 0x4, fixed_abs, tag = 'smem constant byte address 0x4 - core index']
  #allocation1 [shape = 'u32[144,128]{1,0:T(1,128)}', space=vmem, size = 0x12000, scoped, tag = 'internal scratch']
  #allocation2 [shape = 'bf16[16,256]{1,0:T(8,128)(2,1)}', space=vmem, size = 0x2000, scoped, tag = 'scratch operand']
  %s0 = inlined_call_operand.hbm [shape: bf16[96,128], index: 0, kind: input, shape index: {}]
  %s1 = inlined_call_operand.hbm [shape: bf16[32,128], index: 1, kind: input, shape index: {}]
  %s2 = inlined_call_operand.vmem [shape: f32[1,128], index: 2, kind: input, shape index: {}]
  %s3 = inlined_call_operand.hbm [shape: f32[1,128], index: 3, kind: input, shape index: {}]
  %s4 = inlined_call_operand.hbm [shape: bf16[128,256], index: 4, kind: input, shape index: {}]
  %s5 = inlined_call_operand.vmem [shape: f32[1,256], index: 5, kind: input, shape index: {}]
  %s6 = inlined_call_operand.hbm [shape: bf16[256,256], index: 6, kind: input, shape index: {}]
  %s7 = inlined_call_operand.vmem [shape: f32[1,256], index: 7, kind: input, shape index: {}]
  %s8 = inlined_call_operand.hbm [shape: f32[96,256], index: 8, kind: output, shape index: {}]
  %s9 = sld [smem:[#allocation0]]
  $region89: #{tpu_custom_call.1} parent=0
    _
  %s11 = ssub.s32 1, %s9
  %s12 = scalar_select 0, %s11, %s9
  $region1: #{tpu_custom_call.1} parent=0
    #allocation3 [shape = 'u8[8192]{0}', space=vmem, size = 0x2000, scoped, tag = 'input window, operand 0']
    #allocation4 [shape = 's32[2]{0}', space=sflag, size = 0x8, scoped, tag = 'scoped memory for tpu_custom_call.1']
    #allocation5 [shape = 's32[2]{0}', space=sflag, size = 0x8, scoped, tag = 'scoped memory for tpu_custom_call.1']
    #allocation6 [shape = 'u8[8192]{0}', space=vmem, size = 0x2000, scoped, tag = 'input window, operand 1']
    #allocation7 [shape = 's32[2]{0}', space=sflag, size = 0x8, scoped, tag = 'scoped memory for tpu_custom_call.1']
    #allocation8 [shape = 'u8[512]{0}', space=vmem, size = 0x400, scoped, tag = 'input window, operand 3, single buffered']
    #allocation9 [shape = 'u8[65536]{0}', space=vmem, size = 0x10000, scoped, tag = 'input window, operand 4, single buffered']
    #allocation10 [shape = 's32[1]{0}', space=sflag, size = 0x4, scoped, tag = 'scoped memory for tpu_custom_call.1']
    #allocation11 [shape = 'u8[131072]{0}', space=vmem, size = 0x20000, scoped, tag = 'input window, operand 6']
    #allocation12 [shape = 'u8[16384]{0}', space=vmem, size = 0x4000, scoped, tag = 'output window, operand 0']
    %13 = vsyncpa [#allocation4], 0
    %s14 = scalar_lea.sflag [#allocation4], 1
    %15 = vsyncpa %s14, 0
    %16 = vsyncpa [#allocation7], 0
    %s17 = scalar_lea.sflag [#allocation7], 1
    %18 = vsyncpa %s17, 0
    %19 = vsyncpa [#allocation10], 0
    %20 = vsyncpa [#allocation5], 0
    %s21 = scalar_lea.sflag [#allocation5], 1
    %22 = vsyncpa %s21, 0
    loop: start=0, step=1, limit=14
    $region2: #{tpu_custom_call.1} parent=1 // loop_pre_header
      _
    $region3: #{tpu_custom_call.1} parent=1 // loop_header
      %s24 = sphi 0, %s28
      %p25 = scmp.ge.s32.totalorder %s24, 14
      %s31 = sphi 0, %s43
      %s32 = sphi 0, %s39
      %s33 = sphi 0, %s31
      %s34 = sphi 0, %s32
      %s35 = sphi 0, %s33
      %s36 = sphi 0, %s34
      %s46 = sphi 0, %s48
      %s49 = sphi 0, %s46
      %s50 = sphi 0, %s49
      %s66 = sphi 0, %s50
      %s96 = sphi 0, %s98
      %s99 = sphi 0, %s96
      %s100 = sphi 0, %s99
      %s116 = sphi 0, %s100
      %s120 = sphi 0, %s120
      %s122 = sphi 0, %s120
      %s123 = sphi 0, %s122
      %s137 = sphi 0, %s123
      %s141 = sphi 0, %s141
      %s143 = sphi 0, %s141
      %s144 = sphi 0, %s143
      %s158 = sphi 0, %s144
      %s162 = sphi 0, %s162
      %s164 = sphi 0, %s162
      %s165 = sphi 0, %s164
      %s179 = sphi 0, %s165
      %s183 = sphi 0, %s183
      %s185 = sphi 0, %s183
      %s186 = sphi 0, %s185
      %s200 = sphi 0, %s186
      %s206 = sphi 0, %s208
      %s209 = sphi 0, %s206
      %s210 = sphi 0, %s209
      %s226 = sphi 0, %s210
      %s232 = sphi 0, %s234
      %s235 = sphi 0, %s232
      %s236 = sphi 0, %s235
      %s252 = sphi 0, %s236
      %s260 = sphi 0, %s262
      %s263 = sphi 0, %s260
      %s264 = sphi 0, %s263
      %s280 = sphi 0, %s264
    $region4: #{tpu_custom_call.1} parent=1 // loop_header_branch
      %27 = sbr.rel (%p25) target = $region8
    $region5: #{tpu_custom_call.1} parent=1 // loop_body
      %s29 = ssub.s32 %s24, 1
      %s30 = ssub.s32 %s24, 2
      %s37 = sadd.s32 1, %s32
      %p38 = scmp.ge.s32.totalorder %s37, 2
      %s39 = scalar_select %p38, 0, %s37
      %s40 = sadd.s32 1, %s31
      %s41 = scalar_select %p38, %s40, %s31
      %p42 = scmp.ge.s32.totalorder %s41, 6
      %s43 = scalar_select %p42, 0, %s41
      %s44 = ssub.s32 %s31, %s43
      %p45 = scmp.eq.s32.totalorder %s44, 0
      %s47 = sadd.s32 %s46, 1
      %s48 = scalar_select %p45, %s46, %s47
      %p51 = pneg %p45
      %p52 = scmp.eq.s32.totalorder %s24, 11
      %p53 = por %p51, %p52
      %p54 = scmp.ne.s32.totalorder %s46, %s49
      %p55 = scmp.eq.s32.totalorder %s24, 0
      %p56 = por %p54, %p55
      %p57 = scmp.ne.s32.totalorder %s46, %s49
      %p58 = scmp.eq.s32.totalorder %s29, 11
      %p59 = por %p57, %p58
      %p60 = scmp.ne.s32.totalorder %s49, %s50
      %p61 = scmp.eq.s32.totalorder %s29, 0
      %p62 = por %p60, %p61
      %p63 = scmp.ne.s32.totalorder %s49, %s50
      %p64 = scmp.eq.s32.totalorder %s30, 11
      %p65 = por %p63, %p64
      %p67 = scmp.ne.s32.totalorder %s50, %s66
      %p68 = scmp.eq.s32.totalorder %s30, 0
      %p69 = por %p67, %p68
      %p70 = scmp.lt.s32.totalorder %s31, 0
      %s71 = ssub.s32 0, %s31
      %s72 = scalar_select %p70, %s71, %s31
      %s73 = sand.u32 %s72, 1
      %s74 = ssub.s32 0, %s73
      %s75 = scalar_select %p70, %s74, %s73
      %p76 = scmp.ne.s32.totalorder %s75, 0
      %p77 = scmp.lt.s32.totalorder %s75, 0
      %p78 = pnand %p77, %p76
      %p79 = pneg %p78
      %s80 = sadd.s32 %s75, 2
      %s81 = scalar_select %p79, %s80, %s75
      %p82 = scmp.lt.s32.totalorder %s43, 0
      %s83 = ssub.s32 0, %s43
      %s84 = scalar_select %p82, %s83, %s43
      %s85 = sand.u32 %s84, 1
      %s86 = ssub.s32 0, %s85
      %s87 = scalar_select %p82, %s86, %s85
      %p88 = scmp.ne.s32.totalorder %s87, 0
      %p89 = scmp.lt.s32.totalorder %s87, 0
      %p90 = pnand %p89, %p88
      %p91 = pneg %p90
      %s92 = sadd.s32 %s87, 2
      %s93 = scalar_select %p91, %s92, %s87
      %s94 = ssub.s32 %s81, %s93
      %p95 = scmp.eq.s32.totalorder %s94, 0
      %s97 = sadd.s32 %s96, 1
      %s98 = scalar_select %p95, %s96, %s97
      %p101 = pneg %p95
      %p102 = scmp.eq.s32.totalorder %s24, 11
      %p103 = por %p101, %p102
      %p104 = scmp.ne.s32.totalorder %s96, %s99
      %p105 = scmp.eq.s32.totalorder %s24, 0
      %p106 = por %p104, %p105
      %p107 = scmp.ne.s32.totalorder %s96, %s99
      %p108 = scmp.eq.s32.totalorder %s29, 11
      %p109 = por %p107, %p108
      %p110 = scmp.ne.s32.totalorder %s99, %s100
      %p111 = scmp.eq.s32.totalorder %s29, 0
      %p112 = por %p110, %p111
      %p113 = scmp.ne.s32.totalorder %s99, %s100
      %p114 = scmp.eq.s32.totalorder %s30, 11
      %p115 = por %p113, %p114
      %p117 = scmp.ne.s32.totalorder %s100, %s116
      %p118 = scmp.eq.s32.totalorder %s30, 0
      %p119 = por %p117, %p118
      %s121 = sadd.s32 %s120, 1
      %p124 = scmp.eq.s32.totalorder %s24, 11
      %p125 = scmp.ne.s32.totalorder %s120, %s122
      %p126 = scmp.eq.s32.totalorder %s24, 0
      %p127 = por %p125, %p126
      %p128 = scmp.ne.s32.totalorder %s120, %s122
      %p129 = scmp.eq.s32.totalorder %s29, 11
      %p130 = por %p128, %p129
      %p131 = scmp.ne.s32.totalorder %s122, %s123
      %p132 = scmp.eq.s32.totalorder %s29, 0
      %p133 = por %p131, %p132
      %p134 = scmp.ne.s32.totalorder %s122, %s123
      %p135 = scmp.eq.s32.totalorder %s30, 11
      %p136 = por %p134, %p135
      %p138 = scmp.ne.s32.totalorder %s123, %s137
      %p139 = scmp.eq.s32.totalorder %s30, 0
      %p140 = por %p138, %p139
      %s142 = sadd.s32 %s141, 1
      %p145 = scmp.eq.s32.totalorder %s24, 11
      %p146 = scmp.ne.s32.totalorder %s141, %s143
      %p147 = scmp.eq.s32.totalorder %s24, 0
      %p148 = por %p146, %p147
      %p149 = scmp.ne.s32.totalorder %s141, %s143
      %p150 = scmp.eq.s32.totalorder %s29, 11
      %p151 = por %p149, %p150
      %p152 = scmp.ne.s32.totalorder %s143, %s144
      %p153 = scmp.eq.s32.totalorder %s29, 0
      %p154 = por %p152, %p153
      %p155 = scmp.ne.s32.totalorder %s143, %s144
      %p156 = scmp.eq.s32.totalorder %s30, 11
      %p157 = por %p155, %p156
      %p159 = scmp.ne.s32.totalorder %s144, %s158
      %p160 = scmp.eq.s32.totalorder %s30, 0
      %p161 = por %p159, %p160
      %s163 = sadd.s32 %s162, 1
      %p166 = scmp.eq.s32.totalorder %s24, 11
      %p167 = scmp.ne.s32.totalorder %s162, %s164
      %p168 = scmp.eq.s32.totalorder %s24, 0
      %p169 = por %p167, %p168
      %p170 = scmp.ne.s32.totalorder %s162, %s164
      %p171 = scmp.eq.s32.totalorder %s29, 11
      %p172 = por %p170, %p171
      %p173 = scmp.ne.s32.totalorder %s164, %s165
      %p174 = scmp.eq.s32.totalorder %s29, 0
      %p175 = por %p173, %p174
      %p176 = scmp.ne.s32.totalorder %s164, %s165
      %p177 = scmp.eq.s32.totalorder %s30, 11
      %p178 = por %p176, %p177
      %p180 = scmp.ne.s32.totalorder %s165, %s179
      %p181 = scmp.eq.s32.totalorder %s30, 0
      %p182 = por %p180, %p181
      %s184 = sadd.s32 %s183, 1
      %p187 = scmp.eq.s32.totalorder %s24, 11
      %p188 = scmp.ne.s32.totalorder %s183, %s185
      %p189 = scmp.eq.s32.totalorder %s24, 0
      %p190 = por %p188, %p189
      %p191 = scmp.ne.s32.totalorder %s183, %s185
      %p192 = scmp.eq.s32.totalorder %s29, 11
      %p193 = por %p191, %p192
      %p194 = scmp.ne.s32.totalorder %s185, %s186
      %p195 = scmp.eq.s32.totalorder %s29, 0
      %p196 = por %p194, %p195
      %p197 = scmp.ne.s32.totalorder %s185, %s186
      %p198 = scmp.eq.s32.totalorder %s30, 11
      %p199 = por %p197, %p198
      %p201 = scmp.ne.s32.totalorder %s186, %s200
      %p202 = scmp.eq.s32.totalorder %s30, 0
      %p203 = por %p201, %p202
      %s204 = ssub.s32 %s32, %s39
      %p205 = scmp.eq.s32.totalorder %s204, 0
      %s207 = sadd.s32 %s206, 1
      %s208 = scalar_select %p205, %s206, %s207
      %p211 = pneg %p205
      %p212 = scmp.eq.s32.totalorder %s24, 11
      %p213 = por %p211, %p212
      %p214 = scmp.ne.s32.totalorder %s206, %s209
      %p215 = scmp.eq.s32.totalorder %s24, 0
      %p216 = por %p214, %p215
      %p217 = scmp.ne.s32.totalorder %s206, %s209
      %p218 = scmp.eq.s32.totalorder %s29, 11
      %p219 = por %p217, %p218
      %p220 = scmp.ne.s32.totalorder %s209, %s210
      %p221 = scmp.eq.s32.totalorder %s29, 0
      %p222 = por %p220, %p221
      %p223 = scmp.ne.s32.totalorder %s209, %s210
      %p224 = scmp.eq.s32.totalorder %s30, 11
      %p225 = por %p223, %p224
      %p227 = scmp.ne.s32.totalorder %s210, %s226
      %p228 = scmp.eq.s32.totalorder %s30, 0
      %p229 = por %p227, %p228
      %s230 = ssub.s32 %s32, %s39
      %p231 = scmp.eq.s32.totalorder %s230, 0
      %s233 = sadd.s32 %s232, 1
      %s234 = scalar_select %p231, %s232, %s233
      %p237 = pneg %p231
      %p238 = scmp.eq.s32.totalorder %s24, 11
      %p239 = por %p237, %p238
      %p240 = scmp.ne.s32.totalorder %s232, %s235
      %p241 = scmp.eq.s32.totalorder %s24, 0
      %p242 = por %p240, %p241
      %p243 = scmp.ne.s32.totalorder %s232, %s235
      %p244 = scmp.eq.s32.totalorder %s29, 11
      %p245 = por %p243, %p244
      %p246 = scmp.ne.s32.totalorder %s235, %s236
      %p247 = scmp.eq.s32.totalorder %s29, 0
      %p248 = por %p246, %p247
      %p249 = scmp.ne.s32.totalorder %s235, %s236
      %p250 = scmp.eq.s32.totalorder %s30, 11
      %p251 = por %p249, %p250
      %p253 = scmp.ne.s32.totalorder %s236, %s252
      %p254 = scmp.eq.s32.totalorder %s30, 0
      %p255 = por %p253, %p254
      %s256 = ssub.s32 %s31, %s43
      %s257 = ssub.s32 %s32, %s39
      %s258 = sor.u32 %s256, %s257
      %p259 = scmp.eq.s32.totalorder %s258, 0
      %s261 = sadd.s32 %s260, 1
      %s262 = scalar_select %p259, %s260, %s261
      %p265 = pneg %p259
      %p266 = scmp.eq.s32.totalorder %s24, 11
      %p267 = por %p265, %p266
      %p268 = scmp.ne.s32.totalorder %s260, %s263
      %p269 = scmp.eq.s32.totalorder %s24, 0
      %p270 = por %p268, %p269
      %p271 = scmp.ne.s32.totalorder %s260, %s263
      %p272 = scmp.eq.s32.totalorder %s29, 11
      %p273 = por %p271, %p272
      %p274 = scmp.ne.s32.totalorder %s263, %s264
      %p275 = scmp.eq.s32.totalorder %s29, 0
      %p276 = por %p274, %p275
      %p277 = scmp.ne.s32.totalorder %s263, %s264
      %p278 = scmp.eq.s32.totalorder %s30, 11
      %p279 = por %p277, %p278
      %p281 = scmp.ne.s32.totalorder %s264, %s280
      %p282 = scmp.eq.s32.totalorder %s30, 0
      %p283 = por %p281, %p282
      %p284 = scmp.le.s32.totalorder 1, %s24
      %p285 = scmp.lt.s32.totalorder %s24, 13
      %p286 = pnand %p284, %p285
      %p287 = pneg %p286
      // Predicated region
      $region9: #{tpu_custom_call.1} parent=5 // pred_check
        _
      $region10: #{tpu_custom_call.1} parent=5 // pred_check_branch
        %289 = sbr.rel (%p286) target = $region12
      $region11: #{tpu_custom_call.1} parent=5 // pred_region
        %s290 = ssub.s32 %s24, 1
        // Predicated region
        $region13: #{tpu_custom_call.1} parent=11 // pred_check
          %p291 = pneg %p133
        $region14: #{tpu_custom_call.1} parent=11 // pred_check_branch
          %293 = sbr.rel (%p291) target = $region16
        $region15: #{tpu_custom_call.1} parent=11 // pred_region
          _
        $region16: #{tpu_custom_call.1} parent=11 // pred_fallthru
          _
        // Predicated region
        $region17: #{tpu_custom_call.1} parent=11 // pred_check
          %p294 = pneg %p154
        $region18: #{tpu_custom_call.1} parent=11 // pred_check_branch
          %296 = sbr.rel (%p294) target = $region20
        $region19: #{tpu_custom_call.1} parent=11 // pred_region
          %s298 = ssub.s32 16, 16
          %299 = vsyncadd [#allocation7], %s298
          %s301 = sshll.u32 [#allocation8], 4
          %s302 = int_to_ptr.vmem [resolvable:$true] %s301
          %304 = dma.hbm_to_vmem [thread:$0]  %s3, 16, %s302, [#allocation7]
        $region20: #{tpu_custom_call.1} parent=11 // pred_fallthru
          _
        // Predicated region
        $region21: #{tpu_custom_call.1} parent=11 // pred_check
          %p305 = pneg %p175
        $region22: #{tpu_custom_call.1} parent=11 // pred_check_branch
          %307 = sbr.rel (%p305) target = $region24
        $region23: #{tpu_custom_call.1} parent=11 // pred_region
          %s309 = ssub.s32 2048, 2048
          %310 = vsyncadd [#allocation10], %s309
          %s311 = sshll.u32 [#allocation9], 4
          %s312 = int_to_ptr.vmem [resolvable:$true] %s311
          %317 = dma.hbm_to_vmem [thread:$0]  %s4, 2048, %s312, [#allocation10], 128, 128, 8
        $region24: #{tpu_custom_call.1} parent=11 // pred_fallthru
          _
        // Predicated region
        $region25: #{tpu_custom_call.1} parent=11 // pred_check
          %p318 = pneg %p196
        $region26: #{tpu_custom_call.1} parent=11 // pred_check_branch
          %320 = sbr.rel (%p318) target = $region28
        $region27: #{tpu_custom_call.1} parent=11 // pred_region
          _
        $region28: #{tpu_custom_call.1} parent=11 // pred_fallthru
          _
      $region12: #{tpu_custom_call.1} parent=5 // pred_fallthru
        _
      %p321 = scmp.lt.s32.totalorder %s24, 12
      // Predicated region
      $region29: #{tpu_custom_call.1} parent=5 // pred_check
        %p322 = pneg %p321
      $region30: #{tpu_custom_call.1} parent=5 // pred_check_branch
        %324 = sbr.rel (%p322) target = $region32
      $region31: #{tpu_custom_call.1} parent=5 // pred_region
        // Predicated region
        $region33: #{tpu_custom_call.1} parent=31 // pred_check
          %p325 = pneg %p56
        $region34: #{tpu_custom_call.1} parent=31 // pred_check_branch
          %327 = sbr.rel (%p325) target = $region36
        $region35: #{tpu_custom_call.1} parent=31 // pred_region
          %s328 = sand.u32 %s24, 1
          %s329 = scalar_lea.sflag [#allocation4], %s328
          %s330 = sand.u32 %s46, 1
          %s331 = smul.addr %s330, 8
          %s332 = scalar_lea.vmem [#allocation3], %s331
          %s333 = smul.u32 2, %s31
          %s335 = ssub.s32 128, 128
          %336 = vsyncadd %s329, %s335
          %s337 = smul.addr %s333, 64
          %s338 = scalar_lea.hbm %s0, %s337
          %s339 = sshll.u32 %s332, 4
          %s340 = int_to_ptr.vmem [resolvable:$true] %s339
          %345 = dma.hbm_to_vmem [thread:$0]  %s338, 128, %s340, %s329, 64, 64, 4
        $region36: #{tpu_custom_call.1} parent=31 // pred_fallthru
          _
        // Predicated region
        $region37: #{tpu_custom_call.1} parent=31 // pred_check
          %p346 = pneg %p106
        $region38: #{tpu_custom_call.1} parent=31 // pred_check_branch
          %348 = sbr.rel (%p346) target = $region40
        $region39: #{tpu_custom_call.1} parent=31 // pred_region
          %s349 = sand.u32 %s24, 1
          %s350 = scalar_lea.sflag [#allocation7], %s349
          %s351 = sand.u32 %s96, 1
          %s352 = smul.addr %s351, 8
          %s353 = scalar_lea.vmem [#allocation6], %s352
          %p354 = scmp.lt.s32.totalorder %s31, 0
          %s355 = ssub.s32 0, %s31
          %s356 = scalar_select %p354, %s355, %s31
          %s357 = sand.u32 %s356, 1
          %s358 = ssub.s32 0, %s357
          %s359 = scalar_select %p354, %s358, %s357
          %p360 = scmp.ne.s32.totalorder %s359, 0
          %p361 = scmp.lt.s32.totalorder %s359, 0
          %p362 = pnand %p361, %p360
          %p363 = pneg %p362
          %s364 = sadd.s32 %s359, 2
          %s365 = scalar_select %p363, %s364, %s359
          %s366 = smul.u32 2, %s365
          %s368 = ssub.s32 128, 128
          %369 = vsyncadd %s350, %s368
          %s370 = smul.addr %s366, 64
          %s371 = scalar_lea.hbm %s1, %s370
          %s372 = sshll.u32 %s353, 4
          %s373 = int_to_ptr.vmem [resolvable:$true] %s372
          %378 = dma.hbm_to_vmem [thread:$0]  %s371, 128, %s373, %s350, 64, 64, 4
        $region40: #{tpu_custom_call.1} parent=31 // pred_fallthru
          _
        // Predicated region
        $region41: #{tpu_custom_call.1} parent=31 // pred_check
          %p379 = pneg %p216
        $region42: #{tpu_custom_call.1} parent=31 // pred_check_branch
          %381 = sbr.rel (%p379) target = $region44
        $region43: #{tpu_custom_call.1} parent=31 // pred_region
          %s382 = sand.u32 %s24, 1
          %s383 = scalar_lea.sflag [#allocation4], %s382
          %s384 = sand.u32 %s206, 1
          %s385 = smul.addr %s384, 128
          %s386 = scalar_lea.vmem [#allocation11], %s385
          %s388 = ssub.s32 2048, 2048
          %389 = vsyncadd %s383, %s388
          %s390 = smul.addr %s32, 64
          %s391 = scalar_lea.hbm %s6, %s390
          %s392 = sshll.u32 %s386, 4
          %s393 = int_to_ptr.vmem [resolvable:$true] %s392
          %398 = dma.hbm_to_vmem [thread:$0]  %s391, 2048, %s393, %s383, 128, 64, 4
        $region44: #{tpu_custom_call.1} parent=31 // pred_fallthru
          _
        // Predicated region
        $region45: #{tpu_custom_call.1} parent=31 // pred_check
          %p399 = pneg %p242
        $region46: #{tpu_custom_call.1} parent=31 // pred_check_branch
          %401 = sbr.rel (%p399) target = $region48
        $region47: #{tpu_custom_call.1} parent=31 // pred_region
          %p402 = scmp.lt.s32.totalorder %s32, 1
          %s403 = scalar_select %p402, %s32, 1
          %s404 = scalar_lea.vmem %s7, %s403
        $region48: #{tpu_custom_call.1} parent=31 // pred_fallthru
          _
      $region32: #{tpu_custom_call.1} parent=5 // pred_fallthru
        _
      %p405 = scmp.le.s32.totalorder 1, %s24
      %p406 = scmp.lt.s32.totalorder %s24, 13
      %p407 = pnand %p405, %p406
      %p408 = pneg %p407
      // Predicated region
      $region49: #{tpu_custom_call.1} parent=5 // pred_check
        _
      $region50: #{tpu_custom_call.1} parent=5 // pred_check_branch
        %410 = sbr.rel (%p407) target = $region52
      $region51: #{tpu_custom_call.1} parent=5 // pred_region
        %s411 = ssub.s32 %s24, 1
        %s412 = sand.u32 %s29, 1
        %s413 = scalar_lea.sflag [#allocation4], %s412
        %s414 = sand.u32 %s49, 1
        %s415 = smul.addr %s414, 8
        %s416 = scalar_lea.vmem [#allocation3], %s415
        // Predicated region
        $region53: #{tpu_custom_call.1} parent=51 // pred_check
          %p417 = pneg %p62
        $region54: #{tpu_custom_call.1} parent=51 // pred_check_branch
          %419 = sbr.rel (%p417) target = $region56
        $region55: #{tpu_custom_call.1} parent=51 // pred_region
          %420 = dma.done %s413, 128
        $region56: #{tpu_custom_call.1} parent=51 // pred_fallthru
          _
        %s421 = sand.u32 %s29, 1
        %s422 = scalar_lea.sflag [#allocation7], %s421
        %s423 = sand.u32 %s99, 1
        %s424 = smul.addr %s423, 8
        %s425 = scalar_lea.vmem [#allocation6], %s424
        // Predicated region
        $region57: #{tpu_custom_call.1} parent=51 // pred_check
          %p426 = pneg %p112
        $region58: #{tpu_custom_call.1} parent=51 // pred_check_branch
          %428 = sbr.rel (%p426) target = $region60
        $region59: #{tpu_custom_call.1} parent=51 // pred_region
          %429 = dma.done %s422, 128
        $region60: #{tpu_custom_call.1} parent=51 // pred_fallthru
          _
        // Predicated region
        $region61: #{tpu_custom_call.1} parent=51 // pred_check
          %p430 = pneg %p154
        $region62: #{tpu_custom_call.1} parent=51 // pred_check_branch
          %432 = sbr.rel (%p430) target = $region64
        $region63: #{tpu_custom_call.1} parent=51 // pred_region
          %433 = dma.done [#allocation7], 16
        $region64: #{tpu_custom_call.1} parent=51 // pred_fallthru
          _
        // Predicated region
        $region65: #{tpu_custom_call.1} parent=51 // pred_check
          %p434 = pneg %p175
        $region66: #{tpu_custom_call.1} parent=51 // pred_check_branch
          %436 = sbr.rel (%p434) target = $region68
        $region67: #{tpu_custom_call.1} parent=51 // pred_region
          %437 = dma.done [#allocation10], 2048
        $region68: #{tpu_custom_call.1} parent=51 // pred_fallthru
          _
        %s438 = sand.u32 %s29, 1
        %s439 = scalar_lea.sflag [#allocation4], %s438
        %s440 = sand.u32 %s209, 1
        %s441 = smul.addr %s440, 128
        %s442 = scalar_lea.vmem [#allocation11], %s441
        // Predicated region
        $region69: #{tpu_custom_call.1} parent=51 // pred_check
          %p443 = pneg %p222
        $region70: #{tpu_custom_call.1} parent=51 // pred_check_branch
          %445 = sbr.rel (%p443) target = $region72
        $region71: #{tpu_custom_call.1} parent=51 // pred_region
          %446 = dma.done %s439, 2048
        $region72: #{tpu_custom_call.1} parent=51 // pred_fallthru
          _
        %s447 = sand.u32 %s29, 1
        %s448 = scalar_lea.sflag [#allocation4], %s447
        %s449 = sand.u32 %s49, 1
        %s450 = smul.addr %s449, 8
        %s451 = scalar_lea.vmem [#allocation3], %s450
        %p452 = pneg %p62
        %p453 = pneg %p59
        %s454 = sand.u32 %s29, 1
        %s455 = scalar_lea.sflag [#allocation7], %s454
        %s456 = sand.u32 %s99, 1
        %s457 = smul.addr %s456, 8
        %s458 = scalar_lea.vmem [#allocation6], %s457
        %p459 = pneg %p112
        %p460 = pneg %p109
        %p461 = pneg %p133
        %p462 = pneg %p130
        %p463 = pneg %p154
        %p464 = pneg %p151
        %p465 = pneg %p175
        %p466 = pneg %p172
        %p467 = pneg %p196
        %p468 = pneg %p193
        %s469 = sand.u32 %s29, 1
        %s470 = scalar_lea.sflag [#allocation4], %s469
        %s471 = sand.u32 %s209, 1
        %s472 = smul.addr %s471, 128
        %s473 = scalar_lea.vmem [#allocation11], %s472
        %p474 = pneg %p222
        %p475 = pneg %p219
        %p476 = scmp.lt.s32.totalorder %s34, 1
        %s477 = scalar_select %p476, %s34, 1
        %s478 = scalar_lea.vmem %s7, %s477
        %p479 = pneg %p248
        %p480 = pneg %p245
        %p481 = pneg %p276
        %p482 = pneg %p273
        %s483 = sand.u32 %s263, 1
        %s484 = scalar_lea.sflag [#allocation5], %s483
        %s485 = sand.u32 %s263, 1
        %s486 = smul.addr %s485, 16
        %s487 = scalar_lea.vmem [#allocation12], %s486
        %s488 = smul.u32 2, %s33
        %p489 = scmp.lt.s32.totalorder %s33, 0
        %s490 = ssub.s32 0, %s33
        %s491 = scalar_select %p489, %s490, %s33
        %s492 = sand.u32 %s491, 1
        %s493 = ssub.s32 0, %s492
        %s494 = scalar_select %p489, %s493, %s492
        %p495 = scmp.ne.s32.totalorder %s494, 0
        %p496 = scmp.lt.s32.totalorder %s494, 0
        %p497 = pnand %p496, %p495
        %p498 = pneg %p497
        %s499 = sadd.s32 %s494, 2
        %s500 = scalar_select %p498, %s499, %s494
        %s501 = smul.u32 2, %s500
        %p502 = scmp.lt.s32.totalorder %s34, 1
        %s503 = scalar_select %p502, %s34, 1
        %s504 = scalar_lea.vmem %s7, %s503
        %s505 = smul.u32 2, %s33
        %p507 = scmp.eq.s32.totalorder %s34, 0
        // Predicated region
        $region73: #{tpu_custom_call.1} parent=51 // pred_check
          %p508 = pneg %p507
        $region74: #{tpu_custom_call.1} parent=51 // pred_check_branch
          %510 = sbr.rel (%p508) target = $region76
        $region75: #{tpu_custom_call.1} parent=51 // pred_region
          %v511 = vld [vmem:[%s416] sm:$0xf]
          %v512 = vld [vmem:[%s416 + $0x4] sm:$0xf]
          %v513 = vunpack.c.l.bf16 %v511
          %v514 = vunpack.c.l.bf16 %v512
          %515 = vadd.xlane.f32.xlu0 %v513
          %v516 = vpop.xlane.xlu0 %515
          %517 = vadd.xlane.f32.xlu0 %v514
          %v518 = vpop.xlane.xlu0 %517
          %v519 = vrcp.pop 128.0
          %v520 = vmul.f32 %v516, %v519
          %v521 = vmul.f32 %v518, %v519
          %v522 = vsub.f32 %v513, %v520
          %v523 = vsub.f32 %v514, %v521
          %v524 = vmul.f32 %v522, %v522
          %v525 = vmul.f32 %v523, %v523
          %526 = vadd.xlane.f32.xlu0 %v524
          %v527 = vpop.xlane.xlu0 %526
          %528 = vadd.xlane.f32.xlu0 %v525
          %v529 = vpop.xlane.xlu0 %528
          %v530 = vmul.f32 %v527, %v519
          %v531 = vmul.f32 %v529, %v519
          %v532 = vadd.f32 %v530, 1e-05
          %v533 = vadd.f32 %v531, 1e-05
          %v534 = vrsqrt.pop %v532
          %v535 = vrsqrt.pop %v533
          %v536 = vmul.f32 %v522, %v534
          %v537 = vmul.f32 %v523, %v535
          %v538 = vld [vmem:[%s2] sm:$0x1]
          %v540 = vlaneseq
          %v541 = vshrl.u32 %v540, 7
          %v542 = vsub.s32 0, %v541
          %v543 = vrot.slane %v538, %v542
          %v545 = vmul.f32 %v536, %v543
          %v546 = vmul.f32 %v537, %v543
          %v547 = vld [vmem:[#allocation8] sm:$0x1]
          %v549 = vlaneseq
          %v550 = vshrl.u32 %v549, 7
          %v551 = vsub.s32 0, %v550
          %v552 = vrot.slane %v547, %v551
          %v554 = vadd.f32 %v545, %v552
          %v555 = vadd.f32 %v546, %v552
          %v556 = vld [vmem:[%s425] sm:$0xf]
          %v557 = vld [vmem:[%s425 + $0x4] sm:$0xf]
          %v558 = vunpack.c.l.bf16 %v556
          %v559 = vunpack.c.l.bf16 %v557
          %v560 = vadd.f32 %v554, %v558
          %v561 = vadd.f32 %v555, %v559
          %v562 = vpack.c.bf16 %v561, %v560
          %v563 = vld [vmem:[#allocation9] sm:$0xff]
          %v564 = vld [vmem:[#allocation9 + $0x8] sm:$0xff]
          %v565 = vld [vmem:[#allocation9 + $0x10] sm:$0xff]
          %v566 = vld [vmem:[#allocation9 + $0x18] sm:$0xff]
          %v567 = vld [vmem:[#allocation9 + $0x20] sm:$0xff]
          %v568 = vld [vmem:[#allocation9 + $0x28] sm:$0xff]
          %v569 = vld [vmem:[#allocation9 + $0x30] sm:$0xff]
          %v570 = vld [vmem:[#allocation9 + $0x38] sm:$0xff]
          %v571 = vld [vmem:[#allocation9 + $0x40] sm:$0xff]
          %v572 = vld [vmem:[#allocation9 + $0x48] sm:$0xff]
          %v573 = vld [vmem:[#allocation9 + $0x50] sm:$0xff]
          %v574 = vld [vmem:[#allocation9 + $0x58] sm:$0xff]
          %v575 = vld [vmem:[#allocation9 + $0x60] sm:$0xff]
          %v576 = vld [vmem:[#allocation9 + $0x68] sm:$0xff]
          %v577 = vld [vmem:[#allocation9 + $0x70] sm:$0xff]
          %v578 = vld [vmem:[#allocation9 + $0x78] sm:$0xff]
          %v579 = vld [vmem:[%s5] sm:$0x3]
          %v581 = vlaneseq
          %v582 = vshrl.u32 %v581, 7
          %v583 = vsub.s32 0, %v582
          %v584 = vrot.slane %v579, %v583
          %v585 = vlaneseq
          %v586 = vshrl.u32 %v585, 7
          %v587 = vsub.s32 1, %v586
          %v588 = vrot.slane %v579, %v587
          %v607 = vunpack.c.l.b16 %v563
          %v608 = vunpack.c.h.b16 %v563
          %v609 = vunpack.c.l.b16 %v564
          %v610 = vunpack.c.h.b16 %v564
          %v611 = vunpack.c.l.b16 %v565
          %v612 = vunpack.c.h.b16 %v565
          %v613 = vunpack.c.l.b16 %v566
          %v614 = vunpack.c.h.b16 %v566
          %v615 = vunpack.c.l.b16 %v567
          %v616 = vunpack.c.h.b16 %v567
          %v617 = vunpack.c.l.b16 %v568
          %v618 = vunpack.c.h.b16 %v568
          %v619 = vunpack.c.l.b16 %v569
          %v620 = vunpack.c.h.b16 %v569
          %v621 = vunpack.c.l.b16 %v570
          %v622 = vunpack.c.h.b16 %v570
          %v623 = vunpack.c.l.b16 %v571
          %v624 = vunpack.c.h.b16 %v571
          %v625 = vunpack.c.l.b16 %v572
          %v626 = vunpack.c.h.b16 %v572
          %v627 = vunpack.c.l.b16 %v573
          %v628 = vunpack.c.h.b16 %v573
          %v629 = vunpack.c.l.b16 %v574
          %v630 = vunpack.c.h.b16 %v574
          %v631 = vunpack.c.l.b16 %v575
          %v632 = vunpack.c.h.b16 %v575
          %v633 = vunpack.c.l.b16 %v576
          %v634 = vunpack.c.h.b16 %v576
          %v635 = vunpack.c.l.b16 %v577
          %v636 = vunpack.c.h.b16 %v577
          %v637 = vunpack.c.l.b16 %v578
          %v638 = vunpack.c.h.b16 %v578
          %v639 = vpack.c.b16 %v609, %v607
          %v640 = vpack.c.b16 %v610, %v608
          %v641 = vpack.c.b16 %v613, %v611
          %v642 = vpack.c.b16 %v614, %v612
          %v643 = vpack.c.b16 %v617, %v615
          %v644 = vpack.c.b16 %v618, %v616
          %v645 = vpack.c.b16 %v621, %v619
          %v646 = vpack.c.b16 %v622, %v620
          %v647 = vpack.c.b16 %v625, %v623
          %v648 = vpack.c.b16 %v626, %v624
          %v649 = vpack.c.b16 %v629, %v627
          %v650 = vpack.c.b16 %v630, %v628
          %v651 = vpack.c.b16 %v633, %v631
          %v652 = vpack.c.b16 %v634, %v632
          %v653 = vpack.c.b16 %v637, %v635
          %v654 = vpack.c.b16 %v638, %v636
          %671 = vmatprep.subr.bf16.mxu0 %v654
          %672 = vmatpush1.bf16.msra.mxu0 %v653
          %673 = vmatprep.subr.bf16.mxu0 %v652
          %674 = vmatpush1.bf16.msra.mxu0 %v651
          %675 = vmatprep.subr.bf16.mxu0 %v650
          %676 = vmatpush1.bf16.msra.mxu0 %v649
          %677 = vmatprep.subr.bf16.mxu0 %v648
          %678 = vmatpush1.bf16.msra.mxu0 %v647
          %679 = vmatprep.subr.bf16.mxu0 %v646
          %680 = vmatpush1.bf16.msra.mxu0 %v645
          %681 = vmatprep.subr.bf16.mxu0 %v644
          %682 = vmatpush1.bf16.msra.mxu0 %v643
          %683 = vmatprep.subr.bf16.mxu0 %v642
          %684 = vmatpush1.bf16.msra.mxu0 %v641
          %685 = vmatprep.subr.bf16.mxu0 %v640
          %686 = vmatpush1.bf16.msra.mxu0 %v639
          %687 = vmatprep.subr.bf16.mxu0 0
          %688 = vmatpush2.bf16.msra.mxu0 0
          %689 = vmatprep.subr.bf16.mxu0 0
          %690 = vmatpush2.bf16.msra.mxu0 0
          %691 = vmatprep.subr.bf16.mxu0 0
          %692 = vmatpush2.bf16.msra.mxu0 0
          %693 = vmatprep.subr.bf16.mxu0 0
          %694 = vmatpush2.bf16.msra.mxu0 0
          %695 = vmatprep.subr.bf16.mxu0 0
          %696 = vmatpush2.bf16.msra.mxu0 0
          %697 = vmatprep.subr.bf16.mxu0 0
          %698 = vmatpush2.bf16.msra.mxu0 0
          %699 = vmatprep.subr.bf16.mxu0 0
          %700 = vmatpush2.bf16.msra.mxu0 0
          %701 = vmatprep.subr.bf16.mxu0 0
          %702 = vmatpush2.bf16.msra.mxu0 0
          %703 = vmatprep.mubr.bf16.mxu0 0
          %704 = vmatmul.mubr.bf16.gmra.mxu0 %v562
          %v705 = vpop.f32.mrf.mxu0
          %v706 = vadd.f32 %v584, %v705
          %v707 = vpop.f32.mrf.mxu0
          %v708 = vadd.f32 %v588, %v707
          %v709 = vpop.f32.mrf.mxu0
          %v710 = vadd.f32 %v584, %v709
          %v711 = vpop.f32.mrf.mxu0
          %v712 = vadd.f32 %v588, %v711
          %713 = vdwg.mxu0
          %v714 = vmul.f32 %v706, 0.5
          %v715 = vmul.f32 %v708, 0.5
          %v716 = vmul.f32 %v710, 0.5
          %v717 = vmul.f32 %v712, 0.5
          %v718 = vmul.f32 %v706, 0.70710677
          %v719 = vmul.f32 %v708, 0.70710677
          %v720 = vmul.f32 %v710, 0.70710677
          %v721 = vmul.f32 %v712, 0.70710677
          %v722 = verf.f32.pop %v718
          %v723 = verf.f32.pop %v719
          %v724 = verf.f32.pop %v720
          %v725 = verf.f32.pop %v721
          %v726 = vadd.f32 %v722, 1.0
          %v727 = vadd.f32 %v723, 1.0
          %v728 = vadd.f32 %v724, 1.0
          %v729 = vadd.f32 %v725, 1.0
          %v730 = vmul.f32 %v714, %v726
          %v731 = vmul.f32 %v715, %v727
          %v732 = vmul.f32 %v716, %v728
          %v733 = vmul.f32 %v717, %v729
          %v734 = vpack.c.bf16 %v732, %v730
          %v735 = vpack.c.bf16 %v733, %v731
          %v738 = vunpack.c.l.b16 %v734
          %v739 = vunpack.c.l.b16 %v735
          %v740 = vunpack.c.h.b16 %v734
          %v741 = vunpack.c.h.b16 %v735
          %v742 = vpack.c.b16 %v739, %v738
          %v743 = vpack.c.b16 %v741, %v740
          %746 = vst [vmem:[#allocation2] sm:$0xff] %v742
          %747 = vst [vmem:[#allocation2 + $0x8] sm:$0xff] %v743
        $region76: #{tpu_custom_call.1} parent=51 // pred_fallthru
          _
        %v748 = vld [vmem:[#allocation2] sm:$0xff]
        %v749 = vld [vmem:[#allocation2 + $0x8] sm:$0xff]
        %v750 = vld [vmem:[%s442] sm:$0xf]
        %v751 = vld [vmem:[%s442 + $0x4] sm:$0xf]
        %v752 = vld [vmem:[%s442 + $0x8] sm:$0xf]
        %v753 = vld [vmem:[%s442 + $0xc] sm:$0xf]
        %v754 = vld [vmem:[%s442 + $0x10] sm:$0xf]
        %v755 = vld [vmem:[%s442 + $0x14] sm:$0xf]
        %v756 = vld [vmem:[%s442 + $0x18] sm:$0xf]
        %v757 = vld [vmem:[%s442 + $0x1c] sm:$0xf]
        %v758 = vld [vmem:[%s442 + $0x20] sm:$0xf]
        %v759 = vld [vmem:[%s442 + $0x24] sm:$0xf]
        %v760 = vld [vmem:[%s442 + $0x28] sm:$0xf]
        %v761 = vld [vmem:[%s442 + $0x2c] sm:$0xf]
        %v762 = vld [vmem:[%s442 + $0x30] sm:$0xf]
        %v763 = vld [vmem:[%s442 + $0x34] sm:$0xf]
        %v764 = vld [vmem:[%s442 + $0x38] sm:$0xf]
        %v765 = vld [vmem:[%s442 + $0x3c] sm:$0xf]
        %v766 = vld [vmem:[%s442 + $0x40] sm:$0xf]
        %v767 = vld [vmem:[%s442 + $0x44] sm:$0xf]
        %v768 = vld [vmem:[%s442 + $0x48] sm:$0xf]
        %v769 = vld [vmem:[%s442 + $0x4c] sm:$0xf]
        %v770 = vld [vmem:[%s442 + $0x50] sm:$0xf]
        %v771 = vld [vmem:[%s442 + $0x54] sm:$0xf]
        %v772 = vld [vmem:[%s442 + $0x58] sm:$0xf]
        %v773 = vld [vmem:[%s442 + $0x5c] sm:$0xf]
        %v774 = vld [vmem:[%s442 + $0x60] sm:$0xf]
        %v775 = vld [vmem:[%s442 + $0x64] sm:$0xf]
        %v776 = vld [vmem:[%s442 + $0x68] sm:$0xf]
        %v777 = vld [vmem:[%s442 + $0x6c] sm:$0xf]
        %v778 = vld [vmem:[%s442 + $0x70] sm:$0xf]
        %v779 = vld [vmem:[%s442 + $0x74] sm:$0xf]
        %v780 = vld [vmem:[%s442 + $0x78] sm:$0xf]
        %v781 = vld [vmem:[%s442 + $0x7c] sm:$0xf]
        %v782 = vld [vmem:[%s504] sm:$0x1]
        %v784 = vlaneseq
        %v785 = vshrl.u32 %v784, 7
        %v786 = vsub.s32 0, %v785
        %v787 = vrot.slane %v782, %v786
        %v791 = vunpack.c.l.b16 %v748
        %v792 = vunpack.c.h.b16 %v748
        %v793 = vunpack.c.l.b16 %v749
        %v794 = vunpack.c.h.b16 %v749
        %v795 = vpack.c.b16 %v793, %v791
        %v796 = vpack.c.b16 %v794, %v792
        %v831 = vunpack.c.l.b16 %v750
        %v832 = vunpack.c.l.b16 %v751
        %v833 = vunpack.c.l.b16 %v752
        %v834 = vunpack.c.l.b16 %v753
        %v835 = vunpack.c.l.b16 %v754
        %v836 = vunpack.c.l.b16 %v755
        %v837 = vunpack.c.l.b16 %v756
        %v838 = vunpack.c.l.b16 %v757
        %v839 = vunpack.c.l.b16 %v758
        %v840 = vunpack.c.l.b16 %v759
        %v841 = vunpack.c.l.b16 %v760
        %v842 = vunpack.c.l.b16 %v761
        %v843 = vunpack.c.l.b16 %v762
        %v844 = vunpack.c.l.b16 %v763
        %v845 = vunpack.c.l.b16 %v764
        %v846 = vunpack.c.l.b16 %v765
        %v847 = vunpack.c.l.b16 %v766
        %v848 = vunpack.c.l.b16 %v767
        %v849 = vunpack.c.l.b16 %v768
        %v850 = vunpack.c.l.b16 %v769
        %v851 = vunpack.c.l.b16 %v770
        %v852 = vunpack.c.l.b16 %v771
        %v853 = vunpack.c.l.b16 %v772
        %v854 = vunpack.c.l.b16 %v773
        %v855 = vunpack.c.l.b16 %v774
        %v856 = vunpack.c.l.b16 %v775
        %v857 = vunpack.c.l.b16 %v776
        %v858 = vunpack.c.l.b16 %v777
        %v859 = vunpack.c.l.b16 %v778
        %v860 = vunpack.c.l.b16 %v779
        %v861 = vunpack.c.l.b16 %v780
        %v862 = vunpack.c.l.b16 %v781
        %v863 = vpack.c.b16 %v832, %v831
        %v864 = vpack.c.b16 %v834, %v833
        %v865 = vpack.c.b16 %v836, %v835
        %v866 = vpack.c.b16 %v838, %v837
        %v867 = vpack.c.b16 %v840, %v839
        %v868 = vpack.c.b16 %v842, %v841
        %v869 = vpack.c.b16 %v844, %v843
        %v870 = vpack.c.b16 %v846, %v845
        %v871 = vpack.c.b16 %v848, %v847
        %v872 = vpack.c.b16 %v850, %v849
        %v873 = vpack.c.b16 %v852, %v851
        %v874 = vpack.c.b16 %v854, %v853
        %v875 = vpack.c.b16 %v856, %v855
        %v876 = vpack.c.b16 %v858, %v857
        %v877 = vpack.c.b16 %v860, %v859
        %v878 = vpack.c.b16 %v862, %v861
        %895 = vmatprep.subr.bf16.mxu0 0
        %896 = vmatpush1.bf16.msra.mxu0 %v870
        %897 = vmatprep.subr.bf16.mxu0 0
        %898 = vmatpush1.bf16.msra.mxu0 %v869
        %899 = vmatprep.subr.bf16.mxu0 0
        %900 = vmatpush1.bf16.msra.mxu0 %v868
        %901 = vmatprep.subr.bf16.mxu0 0
        %902 = vmatpush1.bf16.msra.mxu0 %v867
        %903 = vmatprep.subr.bf16.mxu0 0
        %904 = vmatpush1.bf16.msra.mxu0 %v866
        %905 = vmatprep.subr.bf16.mxu0 0
        %906 = vmatpush1.bf16.msra.mxu0 %v865
        %907 = vmatprep.subr.bf16.mxu0 0
        %908 = vmatpush1.bf16.msra.mxu0 %v864
        %909 = vmatprep.subr.bf16.mxu0 0
        %910 = vmatpush1.bf16.msra.mxu0 %v863
        %911 = vmatprep.subr.bf16.mxu0 0
        %912 = vmatpush2.bf16.msra.mxu0 %v878
        %913 = vmatprep.subr.bf16.mxu0 0
        %914 = vmatpush2.bf16.msra.mxu0 %v877
        %915 = vmatprep.subr.bf16.mxu0 0
        %916 = vmatpush2.bf16.msra.mxu0 %v876
        %917 = vmatprep.subr.bf16.mxu0 0
        %918 = vmatpush2.bf16.msra.mxu0 %v875
        %919 = vmatprep.subr.bf16.mxu0 0
        %920 = vmatpush2.bf16.msra.mxu0 %v874
        %921 = vmatprep.subr.bf16.mxu0 0
        %922 = vmatpush2.bf16.msra.mxu0 %v873
        %923 = vmatprep.subr.bf16.mxu0 0
        %924 = vmatpush2.bf16.msra.mxu0 %v872
        %925 = vmatprep.subr.bf16.mxu0 0
        %926 = vmatpush2.bf16.msra.mxu0 %v871
        %927 = vmatprep.mubr.bf16.mxu0 %v796
        %928 = vmatmul.mubr.bf16.gmra.mxu0 %v795
        %v929 = vpop.f32.mrf.mxu0
        %v930 = vadd.f32 %v787, %v929
        %v931 = vpop.f32.mrf.mxu0
        %v932 = vpop.f32.mrf.mxu0
        %v933 = vadd.f32 %v787, %v932
        %v934 = vpop.f32.mrf.mxu0
        %935 = vdwg.mxu0
        %936 = vst [vmem:[%s487] sm:$0xff] %v930
        %937 = vst [vmem:[%s487 + $0x8] sm:$0xff] %v933
        %s938 = sand.u32 %s263, 1
        %s939 = scalar_lea.sflag [#allocation5], %s938
        %s940 = sand.u32 %s263, 1
        %s941 = smul.addr %s940, 16
        %s942 = scalar_lea.vmem [#allocation12], %s941
        // Predicated region
        $region77: #{tpu_custom_call.1} parent=51 // pred_check
          %p943 = pneg %p273
        $region78: #{tpu_custom_call.1} parent=51 // pred_check_branch
          %945 = sbr.rel (%p943) target = $region80
        $region79: #{tpu_custom_call.1} parent=51 // pred_region
          %s946 = smul.u32 2, %s33
          %s948 = ssub.s32 256, 256
          %949 = vsyncadd %s939, %s948
          %s950 = smul.addr %s946, 2
          %s951 = sadd.s32 %s34, %s950
          %s952 = smul.addr %s951, 128
          %s953 = scalar_lea.hbm %s8, %s952
          %s954 = sshll.u32 %s942, 4
          %s955 = int_to_ptr.vmem [resolvable:$true] %s954
          %960 = dma.vmem_to_hbm [thread:$0]  %s955, 256, %s953, %s939, 128, 256, 8
        $region80: #{tpu_custom_call.1} parent=51 // pred_fallthru
          _
      $region52: #{tpu_custom_call.1} parent=5 // pred_fallthru
        _
      %p961 = scmp.le.s32.totalorder 2, %s24
      // Predicated region
      $region81: #{tpu_custom_call.1} parent=5 // pred_check
        %p962 = pneg %p961
      $region82: #{tpu_custom_call.1} parent=5 // pred_check_branch
        %964 = sbr.rel (%p962) target = $region84
      $region83: #{tpu_custom_call.1} parent=5 // pred_region
        %s965 = ssub.s32 %s24, 2
        // Predicated region
        $region85: #{tpu_custom_call.1} parent=83 // pred_check
          %p966 = pneg %p279
        $region86: #{tpu_custom_call.1} parent=83 // pred_check_branch
          %968 = sbr.rel (%p966) target = $region88
        $region87: #{tpu_custom_call.1} parent=83 // pred_region
          %s969 = sand.u32 %s264, 1
          %s970 = scalar_lea.sflag [#allocation5], %s969
          %s971 = sand.u32 %s264, 1
          %s972 = smul.addr %s971, 16
          %s973 = scalar_lea.vmem [#allocation12], %s972
          %974 = dma.done %s970, 256
        $region88: #{tpu_custom_call.1} parent=83 // pred_fallthru
          _
      $region84: #{tpu_custom_call.1} parent=5 // pred_fallthru
        _
    $region6: #{tpu_custom_call.1} parent=1 // loop_footer
      %s28 = sadd.s32 1, %s24
    $region7: #{tpu_custom_call.1} parent=1 // loop_footer_branch
      %23 = sbr.rel target = $region3
    $region8: #{tpu_custom_call.1} parent=1 // loop_exit
      _
    %975 = vsyncpa [#allocation4], 1
    %s976 = scalar_lea.sflag [#allocation4], 1
    %977 = vsyncpa %s976, 1
    %978 = vsyncpa [#allocation7], 1
    %s979 = scalar_lea.sflag [#allocation7], 1
    %980 = vsyncpa %s979, 1
    %981 = vsyncpa [#allocation10], 1
    %982 = vsyncpa [#allocation5], 1
    %s983 = scalar_lea.sflag [#allocation5], 1
    %984 = vsyncpa %s983, 1

</llo_original>
